<compile_context>
chip_gen: v5e
topology: v5e:2x2
jax: 0.10.0
libtpu: 0.0.40
codegen_flags: <defaults>
</compile_context>

<pallas_src>
import functools

import jax
import jax.numpy as jnp
from jax.experimental import pallas as pl
from jax.experimental.pallas import tpu as pltpu

LANE = 128
SUBLANE = 8


def _round_up(n: int, m: int) -> int:
    return ((n + m - 1) // m) * m


def _sigmoid_eup(z):
    # sigmoid(z) == 0.5 * tanh(z/2) + 0.5  — tanh runs on the EUP slot.
    return 0.5 * jnp.tanh(0.5 * z) + 0.5


def _mlp_kernel(x_ref, w1_ref, b1_ref, w2_ref, b2_ref, o_ref):
    """Fused 2-layer MLP with sigmoid activations (one batch tile per step).

    x_ref : (TB, Din)      f32 (cast to matmul dtype in-kernel)
    w1_ref: (Din, Hp)      compute dtype (f32 or bf16), Hp = 128 (zero-padded)
    b1_ref: (1, Hp)        f32 (zero-padded)
    w2_ref: (Hp, Dout)     compute dtype, padded rows are zero
    b2_ref: (1, Dout)      f32
    o_ref : (TB, Dout)     f32
    """
    x = x_ref[...].astype(w1_ref.dtype)
    # Layer 1: MXU matmul (f32 accumulate) + f32 bias + EUP sigmoid.
    h = jnp.dot(x, w1_ref[...], preferred_element_type=jnp.float32) + b1_ref[...]
    h = _sigmoid_eup(h)
    # Padded hidden lanes hold sigmoid(0) = 0.5 here; they are cancelled by the
    # zero rows of w2 below.
    h = h.astype(w2_ref.dtype)
    # Layer 2: MXU matmul (f32 accumulate) + f32 bias + EUP sigmoid.
    y = jnp.dot(h, w2_ref[...], preferred_element_type=jnp.float32) + b2_ref[...]
    o_ref[...] = _sigmoid_eup(y).astype(o_ref.dtype)


def prepare_params(w1_t, b1, w2_t, b2, compute_dtype=jnp.float32):
    """One-time (outside hot path): zero-pad only the hidden dim to 128 and
    cast weights to the MXU compute dtype.  Biases stay f32.  Input and output
    feature dims stay unpadded (40 and `units`)."""
    d_in, hidden = w1_t.shape
    _, d_out = w2_t.shape
    h_p = _round_up(hidden, LANE)

    w1p = jnp.zeros((d_in, h_p), compute_dtype).at[:, :hidden].set(
        w1_t.astype(compute_dtype))
    b1p = jnp.zeros((1, h_p), jnp.float32).at[0, :hidden].set(
        b1.astype(jnp.float32))
    w2p = jnp.zeros((h_p, d_out), compute_dtype).at[:hidden, :].set(
        w2_t.astype(compute_dtype))
    b2p = b2.astype(jnp.float32).reshape(1, d_out)
    return w1p, b1p, w2p, b2p


@functools.partial(jax.jit, static_argnames=("tb",))
def navigation_learner_forward(x, w1p, b1p, w2p, b2p, *, tb=4096):
    """x: (B, units+actionSpace) f32.  Params from prepare_params().
    Returns (B, units) f32."""
    B, d_in = x.shape
    d_in_w, h_p = w1p.shape
    assert d_in == d_in_w, "x feature dim must match W1"
    d_out = w2p.shape[1]

    # Batch tiling:
    #  * no padded copy of x — grid uses cdiv, the final partial block's OOB
    #    rows are never written back (rows are independent; no cross-row work).
    #  * aim for >= 2 tiles so the "parallel" axis shards across both
    #    TensorCores on v7x; tile rows are a multiple of 8 (f32 sublane) unless
    #    the tile covers the whole batch.
    if B <= SUBLANE:
        tile_b = B
    else:
        tile_b = min(tb, _round_up(-(-B // 2), SUBLANE))
    grid = (pl.cdiv(B, tile_b),)

    itm = lambda a: a.size * a.dtype.itemsize
    cost = pl.CostEstimate(
        flops=2 * B * (d_in * h_p + h_p * d_out),
        transcendentals=B * (h_p + d_out),
        bytes_accessed=(itm(x) + itm(w1p) + itm(b1p) + itm(w2p) + itm(b2p)
                        + B * d_out * 4),
    )

    out = pl.pallas_call(
        _mlp_kernel,
        out_shape=jax.ShapeDtypeStruct((B, d_out), jnp.float32),
        grid_spec=pltpu.PrefetchScalarGridSpec(
            num_scalar_prefetch=0,
            grid=grid,
            in_specs=[
                # x: last dim 40 equals the full array dim -> legal, unmasked.
                pl.BlockSpec((tile_b, d_in), lambda i: (i, 0)),
                # Weights/biases: constant index_map -> VMEM resident, no re-DMA.
                pl.BlockSpec((d_in, h_p), lambda i: (0, 0)),
                pl.BlockSpec((1, h_p), lambda i: (0, 0)),
                pl.BlockSpec((h_p, d_out), lambda i: (0, 0)),
                pl.BlockSpec((1, d_out), lambda i: (0, 0)),
            ],
            out_specs=pl.BlockSpec((tile_b, d_out), lambda i: (i, 0)),
        ),
        compiler_params=pltpu.CompilerParams(
            dimension_semantics=("parallel",),
        ),
        cost_estimate=cost,
    )(x, w1p, b1p, w2p, b2p)
    return out


def init_params(key, units, action_space, hidden=100):
    """Deterministic init mimicking torch.nn.Linear default:
    U(-1/sqrt(fan_in), 1/sqrt(fan_in)) for weight and bias.
    Weights stored pre-transposed: (in_features, out_features)."""
    d_in = units + action_space
    k1, k2, k3, k4 = jax.random.split(key, 4)
    bound1 = 1.0 / jnp.sqrt(d_in)
    bound2 = 1.0 / jnp.sqrt(hidden)
    w1_t = jax.random.uniform(k1, (d_in, hidden), jnp.float32, -bound1, bound1)
    b1 = jax.random.uniform(k2, (hidden,), jnp.float32, -bound1, bound1)
    w2_t = jax.random.uniform(k3, (hidden, units), jnp.float32, -bound2, bound2)
    b2 = jax.random.uniform(k4, (units,), jnp.float32, -bound2, bound2)
    return w1_t, b1, w2_t, b2


def reference_forward(x, w1_t, b1, w2_t, b2):
    h = jax.nn.sigmoid(x @ w1_t + b1)
    return jax.nn.sigmoid(h @ w2_t + b2)


if __name__ == "__main__":
    units = 32
    action_space = 8
    batch = 8  # small demo batch; wrapper tiles arbitrary B

    key = jax.random.PRNGKey(0)
    kx, kp = jax.random.split(key)

    # Input: concatenation of state (units) and one-hot action (actionSpace).
    x = jax.random.uniform(kx, (batch, units + action_space), jnp.float32)
    w1_t, b1, w2_t, b2 = init_params(kp, units, action_space)
    ref = reference_forward(x, w1_t, b1, w2_t, b2)

    # --- f32 compute path (matches reference) ---
    p_f32 = prepare_params(w1_t, b1, w2_t, b2, compute_dtype=jnp.float32)
    out = navigation_learner_forward(x, *p_f32)
    out = jax.block_until_ready(out)
    assert out.shape == (batch, units)
    assert jnp.allclose(out, ref, atol=1e-5, rtol=1e-5), "f32 mismatch vs reference"

    # --- bf16-weight MXU path (f32 x in HBM, in-kernel cast, f32 accumulate) ---
    p_bf16 = prepare_params(w1_t, b1, w2_t, b2, compute_dtype=jnp.bfloat16)
    out_bf = navigation_learner_forward(x, *p_bf16)
    out_bf = jax.block_until_ready(out_bf)
    assert out_bf.shape == (batch, units)
    assert jnp.allclose(out_bf, ref, atol=2e-2, rtol=2e-2), "bf16 mismatch vs reference"

    # --- larger, non-multiple batch: exercises grid>1, dual-TC tile sizing,
    #     and the masked partial final block ---
    big_batch = 1000
    xb = jax.random.uniform(jax.random.PRNGKey(1),
                            (big_batch, units + action_space), jnp.float32)
    out_big = navigation_learner_forward(xb, *p_f32)
    out_big = jax.block_until_ready(out_big)
    ref_big = reference_forward(xb, w1_t, b1, w2_t, b2)
    assert out_big.shape == (big_batch, units)
    assert jnp.allclose(out_big, ref_big, atol=1e-5, rtol=1e-5), "tiled mismatch"

    # TODO(synk): choose()/learn() involve host-side action sampling and an SGD
    # training step (autograd + optimizer), not part of the forward pass; not
    # implemented as kernels.
    print("KERNEL_OK")
</pallas_src>

<mosaic_0001>
module attributes {stable_mosaic.version = 11 : i64} {
  func.func @_mlp_kernel(%arg0: i32, %arg1: memref<8x40xf32, #tpu.memory_space<vmem>>, %arg2: memref<40x128xf32, #tpu.memory_space<vmem>>, %arg3: memref<1x128xf32, #tpu.memory_space<vmem>>, %arg4: memref<128x32xf32, #tpu.memory_space<vmem>>, %arg5: memref<1x32xf32, #tpu.memory_space<vmem>>, %arg6: memref<8x32xf32, #tpu.memory_space<vmem>>) attributes {dimension_semantics = [#tpu.dimension_semantics<parallel>], iteration_bounds = array<i64: 1>, scalar_prefetch = 0 : i64, scratch_operands = 0 : i64, tpu.core_type = #tpu.core_type<tc>, window_params = [{transform_indices = @transform_0, window_bounds = array<i64: 8, 40>}, {pipeline_mode = #tpu.pipeline_mode<synchronous>, transform_indices = @transform_1, window_bounds = array<i64: 40, 128>}, {pipeline_mode = #tpu.pipeline_mode<synchronous>, transform_indices = @transform_2, window_bounds = array<i64: 1, 128>}, {pipeline_mode = #tpu.pipeline_mode<synchronous>, transform_indices = @transform_3, window_bounds = array<i64: 128, 32>}, {pipeline_mode = #tpu.pipeline_mode<synchronous>, transform_indices = @transform_4, window_bounds = array<i64: 1, 32>}, {transform_indices = @transform_5, window_bounds = array<i64: 8, 32>}]} {
    %c0 = arith.constant 0 : index
    %c0_0 = arith.constant 0 : index
    %0 = vector.load %arg1[%c0, %c0_0] : memref<8x40xf32, #tpu.memory_space<vmem>>, vector<8x40xf32>
    %c0_1 = arith.constant 0 : index
    %c0_2 = arith.constant 0 : index
    %1 = vector.load %arg2[%c0_1, %c0_2] : memref<40x128xf32, #tpu.memory_space<vmem>>, vector<40x128xf32>
    %cst = arith.constant dense<0.000000e+00> : vector<8x128xf32>
    %2 = tpu.matmul %0, %1, %cst {dimension_numbers = #tpu.dot_dimension_numbers<[1], [0], [0], [1], [0, 0, 1, 1], [], []>} : vector<8x40xf32>, vector<40x128xf32>, vector<8x128xf32> -> vector<8x128xf32>
    %c0_3 = arith.constant 0 : index
    %c0_4 = arith.constant 0 : index
    %3 = vector.load %arg3[%c0_3, %c0_4] : memref<1x128xf32, #tpu.memory_space<vmem>>, vector<1x128xf32>
    %4 = vector.broadcast %3 : vector<1x128xf32> to vector<8x128xf32>
    %5 = arith.addf %2, %4 : vector<8x128xf32>
    %cst_5 = arith.constant 5.000000e-01 : f32
    %6 = vector.broadcast %cst_5 : f32 to vector<8x128xf32>
    %7 = arith.mulf %6, %5 : vector<8x128xf32>
    %8 = math.tanh %7 : vector<8x128xf32>
    %cst_6 = arith.constant 5.000000e-01 : f32
    %9 = vector.broadcast %cst_6 : f32 to vector<8x128xf32>
    %10 = arith.mulf %9, %8 : vector<8x128xf32>
    %cst_7 = arith.constant 5.000000e-01 : f32
    %11 = vector.broadcast %cst_7 : f32 to vector<8x128xf32>
    %12 = arith.addf %10, %11 : vector<8x128xf32>
    %c0_8 = arith.constant 0 : index
    %c0_9 = arith.constant 0 : index
    %13 = vector.load %arg4[%c0_8, %c0_9] : memref<128x32xf32, #tpu.memory_space<vmem>>, vector<128x32xf32>
    %cst_10 = arith.constant dense<0.000000e+00> : vector<8x32xf32>
    %14 = tpu.matmul %12, %13, %cst_10 {dimension_numbers = #tpu.dot_dimension_numbers<[1], [0], [0], [1], [0, 0, 1, 1], [], []>} : vector<8x128xf32>, vector<128x32xf32>, vector<8x32xf32> -> vector<8x32xf32>
    %c0_11 = arith.constant 0 : index
    %c0_12 = arith.constant 0 : index
    %15 = vector.load %arg5[%c0_11, %c0_12] : memref<1x32xf32, #tpu.memory_space<vmem>>, vector<1x32xf32>
    %16 = vector.broadcast %15 : vector<1x32xf32> to vector<8x32xf32>
    %17 = arith.addf %14, %16 : vector<8x32xf32>
    %cst_13 = arith.constant 5.000000e-01 : f32
    %18 = vector.broadcast %cst_13 : f32 to vector<8x32xf32>
    %19 = arith.mulf %18, %17 : vector<8x32xf32>
    %20 = math.tanh %19 : vector<8x32xf32>
    %cst_14 = arith.constant 5.000000e-01 : f32
    %21 = vector.broadcast %cst_14 : f32 to vector<8x32xf32>
    %22 = arith.mulf %21, %20 : vector<8x32xf32>
    %cst_15 = arith.constant 5.000000e-01 : f32
    %23 = vector.broadcast %cst_15 : f32 to vector<8x32xf32>
    %24 = arith.addf %22, %23 : vector<8x32xf32>
    %c0_16 = arith.constant 0 : index
    %c0_17 = arith.constant 0 : index
    %25 = vector.load %arg6[%c0_16, %c0_17] : memref<8x32xf32, #tpu.memory_space<vmem>>, vector<8x32xf32>
    tpu.vector_store %arg6[%c0_16, %c0_17], %24 {strides = array<i32>} : memref<8x32xf32, #tpu.memory_space<vmem>>, vector<8x32xf32>,
    return
  }
  func.func @transform_0(%arg0: i32) -> (i32, i32) {
    %c0_i32 = arith.constant 0 : i32
    %c0_i32_0 = arith.constant 0 : i32
    return %arg0, %c0_i32 : i32, i32
  }
  func.func @transform_1(%arg0: i32) -> (i32, i32) {
    %c0_i32 = arith.constant 0 : i32
    %c0_i32_0 = arith.constant 0 : i32
    %c0_i32_1 = arith.constant 0 : i32
    return %c0_i32, %c0_i32_0 : i32, i32
  }
  func.func @transform_2(%arg0: i32) -> (i32, i32) {
    %c0_i32 = arith.constant 0 : i32
    %c0_i32_0 = arith.constant 0 : i32
    %c0_i32_1 = arith.constant 0 : i32
    return %c0_i32, %c0_i32_0 : i32, i32
  }
  func.func @transform_3(%arg0: i32) -> (i32, i32) {
    %c0_i32 = arith.constant 0 : i32
    %c0_i32_0 = arith.constant 0 : i32
    %c0_i32_1 = arith.constant 0 : i32
    return %c0_i32, %c0_i32_0 : i32, i32
  }
  func.func @transform_4(%arg0: i32) -> (i32, i32) {
    %c0_i32 = arith.constant 0 : i32
    %c0_i32_0 = arith.constant 0 : i32
    %c0_i32_1 = arith.constant 0 : i32
    return %c0_i32, %c0_i32_0 : i32, i32
  }
  func.func @transform_5(%arg0: i32) -> (i32, i32) {
    %c0_i32 = arith.constant 0 : i32
    %c0_i32_0 = arith.constant 0 : i32
    return %arg0, %c0_i32 : i32, i32
  }
}

</mosaic_0001>

<llo_original>
// kernel: navigation_learner_forward.1
$region0: #{navigation_learner_forward.1}
  #allocation0 [shape = 'u32[]', space=smem, size = 0x4, offset = 0x4, fixed_abs, tag = 'smem constant byte address 0x4 - core index']
  #allocation1 [shape = 'u32[72,128]{1,0:T(1,128)}', space=vmem, size = 0x9000, scoped, tag = 'internal scratch']
  %s0 = inlined_call_operand.vmem [shape: f32[8,40], index: 0, kind: input, shape index: {}]
  %s1 = inlined_call_operand.vmem [shape: f32[40,128], index: 1, kind: input, shape index: {}]
  %s2 = inlined_call_operand.vmem [shape: f32[1,128], index: 2, kind: input, shape index: {}]
  %s3 = inlined_call_operand.vmem [shape: f32[128,32], index: 3, kind: input, shape index: {}]
  %s4 = inlined_call_operand.vmem [shape: f32[1,32], index: 4, kind: input, shape index: {}]
  %s5 = inlined_call_operand.hbm [shape: f32[8,32], index: 5, kind: output, shape index: {}]
  %s6 = sld [smem:[#allocation0]]
  $region30: #{navigation_learner_forward.1} parent=0
    _
  %s8 = ssub.s32 1, %s6
  %s9 = scalar_select 0, %s8, %s6
  $region1: #{navigation_learner_forward.1} parent=0
    #allocation2 [shape = 'u8[4096]{0}', space=vmem, size = 0x1000, scoped, tag = 'output window, operand 0, single buffered']
    #allocation3 [shape = 's32[1]{0}', space=sflag, size = 0x4, scoped, tag = 'scoped memory for navigation_learner_forward.1']
    %10 = vsyncpa [#allocation3], 0
    // Predicated region
    $region2: #{navigation_learner_forward.1} parent=1 // pred_check
      _
    $region3: #{navigation_learner_forward.1} parent=1 // pred_check_branch
      %12 = sbr.rel (0) target = $region5
    $region4: #{navigation_learner_forward.1} parent=1 // pred_region
      _
    $region5: #{navigation_learner_forward.1} parent=1 // pred_fallthru
      _
    // Predicated region
    $region6: #{navigation_learner_forward.1} parent=1 // pred_check
      _
    $region7: #{navigation_learner_forward.1} parent=1 // pred_check_branch
      %14 = sbr.rel (0) target = $region9
    $region8: #{navigation_learner_forward.1} parent=1 // pred_region
      _
    $region9: #{navigation_learner_forward.1} parent=1 // pred_fallthru
      _
    // Predicated region
    $region10: #{navigation_learner_forward.1} parent=1 // pred_check
      _
    $region11: #{navigation_learner_forward.1} parent=1 // pred_check_branch
      %16 = sbr.rel (0) target = $region13
    $region12: #{navigation_learner_forward.1} parent=1 // pred_region
      _
    $region13: #{navigation_learner_forward.1} parent=1 // pred_fallthru
      _
    // Predicated region
    $region14: #{navigation_learner_forward.1} parent=1 // pred_check
      _
    $region15: #{navigation_learner_forward.1} parent=1 // pred_check_branch
      %18 = sbr.rel (0) target = $region17
    $region16: #{navigation_learner_forward.1} parent=1 // pred_region
      _
    $region17: #{navigation_learner_forward.1} parent=1 // pred_fallthru
      _
    // Predicated region
    $region18: #{navigation_learner_forward.1} parent=1 // pred_check
      _
    $region19: #{navigation_learner_forward.1} parent=1 // pred_check_branch
      %20 = sbr.rel (0) target = $region21
    $region20: #{navigation_learner_forward.1} parent=1 // pred_region
      _
    $region21: #{navigation_learner_forward.1} parent=1 // pred_fallthru
      _
    %v21 = vld [vmem:[%s0] sm:$0xff]
    %v22 = vld [vmem:[%s1] sm:$0xff]
    %v23 = vld [vmem:[%s1 + $0x8] sm:$0xff]
    %v24 = vld [vmem:[%s1 + $0x10] sm:$0xff]
    %v25 = vld [vmem:[%s1 + $0x18] sm:$0xff]
    %v26 = vld [vmem:[%s1 + $0x20] sm:$0xff]
    %v27 = vld [vmem:[%s2] sm:$0x1]
    %v29 = vperm.slane %v27, 0
    %vm31 = vcmask 326656
    %v33 = vsel %vm31, %v21, 0
    %35 = vmatpush.msra.mxu0 0.0
    %36 = vmatpush.msra.mxu0 0.0
    %37 = vmatpush.msra.mxu0 0.0
    %38 = vmatpush.msra.mxu0 0.0
    %39 = vmatpush.msra.mxu0 0.0
    %40 = vmatpush.msra.mxu0 0.0
    %41 = vmatpush.msra.mxu0 0.0
    %42 = vmatpush.msra.mxu0 0.0
    %43 = vmatpush.msra.mxu0 0.0
    %44 = vmatpush.msra.mxu0 0.0
    %45 = vmatpush.msra.mxu0 0.0
    %46 = vmatpush.msra.mxu0 %v26
    %47 = vmatpush.msra.mxu0 %v25
    %48 = vmatpush.msra.mxu0 %v24
    %49 = vmatpush.msra.mxu0 %v23
    %50 = vmatpush.msra.mxu0 %v22
    %51 = vmatmul.f32.gmra.mxu0 %v33
    %v52 = vpop.f32.mrf.mxu0
    %v53 = vadd.f32 %v29, %v52
    %54 = vdwg.mxu0
    %v55 = vmul.f32 %v53, 0.5
    %v56 = vtanh.pop %v55
    %v57 = vmul.f32 %v56, 0.5
    %v58 = vadd.f32 %v57, 0.5
    %v59 = vld [vmem:[%s3] sm:$0xff]
    %v60 = vld [vmem:[%s3 + $0x8] sm:$0xff]
    %v61 = vld [vmem:[%s3 + $0x10] sm:$0xff]
    %v62 = vld [vmem:[%s3 + $0x18] sm:$0xff]
    %v63 = vld [vmem:[%s3 + $0x20] sm:$0xff]
    %v64 = vld [vmem:[%s3 + $0x28] sm:$0xff]
    %v65 = vld [vmem:[%s3 + $0x30] sm:$0xff]
    %v66 = vld [vmem:[%s3 + $0x38] sm:$0xff]
    %v67 = vld [vmem:[%s3 + $0x40] sm:$0xff]
    %v68 = vld [vmem:[%s3 + $0x48] sm:$0xff]
    %v69 = vld [vmem:[%s3 + $0x50] sm:$0xff]
    %v70 = vld [vmem:[%s3 + $0x58] sm:$0xff]
    %v71 = vld [vmem:[%s3 + $0x60] sm:$0xff]
    %v72 = vld [vmem:[%s3 + $0x68] sm:$0xff]
    %v73 = vld [vmem:[%s3 + $0x70] sm:$0xff]
    %v74 = vld [vmem:[%s3 + $0x78] sm:$0xff]
    %v75 = vld [vmem:[%s4] sm:$0x1]
    %v77 = vperm.slane %v75, 0
    %79 = vmatpush.msra.mxu0 %v74
    %80 = vmatpush.msra.mxu0 %v73
    %81 = vmatpush.msra.mxu0 %v72
    %82 = vmatpush.msra.mxu0 %v71
    %83 = vmatpush.msra.mxu0 %v70
    %84 = vmatpush.msra.mxu0 %v69
    %85 = vmatpush.msra.mxu0 %v68
    %86 = vmatpush.msra.mxu0 %v67
    %87 = vmatpush.msra.mxu0 %v66
    %88 = vmatpush.msra.mxu0 %v65
    %89 = vmatpush.msra.mxu0 %v64
    %90 = vmatpush.msra.mxu0 %v63
    %91 = vmatpush.msra.mxu0 %v62
    %92 = vmatpush.msra.mxu0 %v61
    %93 = vmatpush.msra.mxu0 %v60
    %94 = vmatpush.msra.mxu0 %v59
    %95 = vmatmul.f32.gmra.mxu0 %v58
    %v96 = vpop.f32.mrf.mxu0
    %v97 = vadd.f32 %v77, %v96
    %98 = vdwg.mxu0
    %v99 = vmul.f32 %v97, 0.5
    %v100 = vtanh.pop %v99
    %v101 = vmul.f32 %v100, 0.5
    %v102 = vadd.f32 %v101, 0.5
    %vm103 = vcmask 261120
    %104 = vst.msk [vmem:[#allocation2] sm:$0xff] %vm103, %v102
    // Predicated region
    $region22: #{navigation_learner_forward.1} parent=1 // pred_check
      _
    $region23: #{navigation_learner_forward.1} parent=1 // pred_check_branch
      %106 = sbr.rel (0) target = $region25
    $region24: #{navigation_learner_forward.1} parent=1 // pred_region
      %108 = vsyncadd [#allocation3], 0
      %s110 = sshll.u32 [#allocation2], 4
      %s111 = int_to_ptr.vmem [resolvable:$true] %s110
      %s112 = sshll.u32 %s5, 4
      %s113 = int_to_ptr.hbm [resolvable:$true] %s112
      %115 = dma.vmem_to_hbm [thread:$0]  %s111, 128, %s113, [#allocation3]
    $region25: #{navigation_learner_forward.1} parent=1 // pred_fallthru
      _
    // Predicated region
    $region26: #{navigation_learner_forward.1} parent=1 // pred_check
      _
    $region27: #{navigation_learner_forward.1} parent=1 // pred_check_branch
      %117 = sbr.rel (0) target = $region29
    $region28: #{navigation_learner_forward.1} parent=1 // pred_region
      %119 = dma.done [#allocation3], 128
    $region29: #{navigation_learner_forward.1} parent=1 // pred_fallthru
      _
    %120 = vsyncpa [#allocation3], 1

</llo_original>
